<compile_context>
chip_gen: v7x
topology: tpu7x:2x2x1
jax: 0.10.0
libtpu: 0.0.40
codegen_flags: <defaults>
</compile_context>

<pallas_src>
import functools

import jax
import jax.numpy as jnp
from jax.experimental import pallas as pl
from jax.experimental.pallas import tpu as pltpu


def _round_up(v, m):
    return (v + m - 1) // m * m


def _vmem_budget_bytes():
    """Generation-aware scoped-VMEM limit (v7x: 64 MiB physical; v5e/v6e: 128 MiB)."""
    try:
        info = pltpu.get_tpu_info()
        cap = getattr(info, "vmem_capacity_bytes", 64 << 20)
    except Exception:
        cap = 64 << 20                # conservative: assume v7x-class if query fails
    if cap <= (64 << 20):
        return 48 << 20               # v7x: leave headroom inside 64 MiB, both TCs live
    return 100 << 20                  # v5e / v6e: use most of the 128 MiB


def _perm_equi1_max_kernel(x_ref, w_ref, b_ref, o_ref):
    x = x_ref[...]                               # (tb, N, Din)  f32
    xm = jnp.max(x, axis=1, keepdims=True)       # (tb, 1, Din)  sublane reduce (XLU)
    xc = x - xm                                  # (tb, N, Din)
    # (tb, N, Din) @ (Din, Dout_pad) -> (tb, N, Dout_pad); no in-kernel reshapes.
    y = jax.lax.dot_general(
        xc, w_ref[...],
        dimension_numbers=(((2,), (0,)), ((), ())),
        preferred_element_type=jnp.float32,
    )
    o_ref[...] = (y + b_ref[...]).astype(o_ref.dtype)


@functools.partial(jax.jit, static_argnames=("tb",))
def perm_equi1_max(x, w, b, *, tb=None):
    """PermEqui1_max forward: Linear(x - max(x, axis=1, keepdims=True)).

    x: [B, N, in_dim] f32
    w: [in_dim, out_dim] f32   (NOTE: pre-transposed vs. torch.nn.Linear.weight)
    b: [out_dim] or [1, out_dim] f32
    """
    B, N, Din = x.shape
    Dout = w.shape[1]
    b = b.reshape(1, Dout)

    # Lane-dense output: pad Dout to a multiple of 128 so stores are unmasked vst
    # and the out DMA is lane-dense; slice back after the call.
    # TODO(synk): also pad Din to a multiple of 128 when the caller's data layout
    # is under our control (here x arrives with Din as the full-array last dim,
    # which BlockSpec permits without padding).
    dout_p = _round_up(Dout, 128)
    if dout_p != Dout:
        w = jnp.pad(w, ((0, 0), (0, dout_p - Dout)))
        b = jnp.pad(b, ((0, 0), (0, dout_p - Dout)))

    vmem_limit = _vmem_budget_bytes()

    if tb is None:
        # Per-batch-row VMEM working set (f32 bytes) counting (8,128) layout padding:
        # double-buffered x/out DMA blocks plus one set of in-kernel temps
        # (xc and the f32 dot result).
        n_pad = _round_up(N, 8)
        din_l = _round_up(Din, 128)
        per_row = 4 * n_pad * (2 * din_l + 2 * dout_p      # x / out, double-buffered
                               + din_l + dout_p)           # xc temp + dot result
        resident = 4 * (2 * din_l * dout_p + 2 * dout_p)   # weight + bias buffers
        budget = int(vmem_limit * 0.75) - resident
        tb_budget = budget // per_row
        if tb_budget < 1:
            # TODO(synk): two-pass fallback (per-batch max with an "arbitrary"
            # N-chunk axis + accumulator, then a tiled (B*N,Din)@(Din,Dout) matmul)
            # for point-cloud-sized N that overflows v7x's 64 MiB with N un-tiled.
            tb_budget = 1
        # Keep >= 2 grid steps (prefer >= 4) so double-buffering and v7x dual-TC
        # sharding of the "parallel" batch axis stay active.
        tb = max(1, min(int(tb_budget), pl.cdiv(B, 4) if B >= 4 else 1))
        # Prefer a tb that divides B: avoids wasted DMA/MXU work on OOB padding rows.
        while tb > 1 and B % tb != 0:
            tb -= 1

    grid = (pl.cdiv(B, tb),)

    cost = pl.CostEstimate(
        flops=2 * B * N * Din * dout_p + 2 * B * N * Din,   # matmul + (max, sub)
        transcendentals=0,
        bytes_accessed=(x.size + w.size + b.size + B * N * dout_p) * 4,
    )

    out = pl.pallas_call(
        _perm_equi1_max_kernel,
        out_shape=jax.ShapeDtypeStruct((B, N, dout_p), jnp.float32),
        grid=grid,
        in_specs=[
            pl.BlockSpec((tb, N, Din), lambda i: (i, 0, 0)),   # batch-tiled input
            pl.BlockSpec((Din, dout_p), lambda i: (0, 0)),     # resident weight
            pl.BlockSpec((1, dout_p), lambda i: (0, 0)),       # resident bias
        ],
        out_specs=pl.BlockSpec((tb, N, dout_p), lambda i: (i, 0, 0)),
        compiler_params=pltpu.CompilerParams(
            dimension_semantics=("parallel",),   # batch tiles independent -> v7x dual-TC
            vmem_limit_bytes=vmem_limit,
        ),
        cost_estimate=cost,
    )(x, w, b)

    return out[:, :, :Dout] if dout_p != Dout else out


def init_params(key, in_dim, out_dim):
    """PyTorch-default Linear init; weight stored pre-transposed as [in, out]."""
    kw, kb = jax.random.split(key)
    bound = 1.0 / (in_dim ** 0.5)
    w = jax.random.uniform(kw, (in_dim, out_dim), jnp.float32, -bound, bound)
    b = jax.random.uniform(kb, (1, out_dim), jnp.float32, -bound, bound)
    return w, b


def reference_forward(x, w, b):
    xm = jnp.max(x, axis=1, keepdims=True)
    return (x - xm) @ w + b


if __name__ == "__main__":
    # Small shapes: batch=8 sets, N=16 points per set, in_dim=32, out_dim=64.
    B, N, in_dim, out_dim = 8, 16, 32, 64

    key = jax.random.PRNGKey(0)
    kx, kp = jax.random.split(key)
    x = jax.random.normal(kx, (B, N, in_dim), jnp.float32)
    w, b = init_params(kp, in_dim, out_dim)

    out = perm_equi1_max(x, w, b)   # heuristic picks tb=2 -> grid=(4,), pipelined
    out = jax.block_until_ready(out)

    ref = reference_forward(x, w, b)
    assert out.shape == (B, N, out_dim)
    assert jnp.allclose(out, ref, atol=1e-4, rtol=1e-4), "mismatch vs reference"

    print("KERNEL_OK")
</pallas_src>

<mosaic_0001>
module attributes {stable_mosaic.version = 11 : i64} {
  func.func @_perm_equi1_max_kernel(%arg0: i32, %arg1: memref<2x16x32xf32, #tpu.memory_space<vmem>>, %arg2: memref<32x128xf32, #tpu.memory_space<vmem>>, %arg3: memref<1x128xf32, #tpu.memory_space<vmem>>, %arg4: memref<2x16x128xf32, #tpu.memory_space<vmem>>) attributes {dimension_semantics = [#tpu.dimension_semantics<parallel>], iteration_bounds = array<i64: 4>, scalar_prefetch = 0 : i64, scratch_operands = 0 : i64, tpu.core_type = #tpu.core_type<tc>, window_params = [{transform_indices = @transform_0, window_bounds = array<i64: 2, 16, 32>}, {pipeline_mode = #tpu.pipeline_mode<synchronous>, transform_indices = @transform_1, window_bounds = array<i64: 32, 128>}, {pipeline_mode = #tpu.pipeline_mode<synchronous>, transform_indices = @transform_2, window_bounds = array<i64: 1, 128>}, {transform_indices = @transform_3, window_bounds = array<i64: 2, 16, 128>}]} {
    %c0 = arith.constant 0 : index
    %c0_0 = arith.constant 0 : index
    %c0_1 = arith.constant 0 : index
    %0 = vector.load %arg1[%c0, %c0_0, %c0_1] : memref<2x16x32xf32, #tpu.memory_space<vmem>>, vector<2x16x32xf32>
    %cst = arith.constant dense<0xFF800000> : vector<2x32xf32>
    %1 = vector.multi_reduction <maximumf>, %0, %cst [1] : vector<2x16x32xf32> to vector<2x32xf32>
    %2 = vector.shape_cast %1 : vector<2x32xf32> to vector<2x1x32xf32>
    %3 = vector.broadcast %2 : vector<2x1x32xf32> to vector<2x16x32xf32>
    %4 = arith.subf %0, %3 : vector<2x16x32xf32>
    %c0_2 = arith.constant 0 : index
    %c0_3 = arith.constant 0 : index
    %5 = vector.load %arg2[%c0_2, %c0_3] : memref<32x128xf32, #tpu.memory_space<vmem>>, vector<32x128xf32>
    %cst_4 = arith.constant dense<0.000000e+00> : vector<2x16x128xf32>
    %6 = tpu.matmul %4, %5, %cst_4 {dimension_numbers = #tpu.dot_dimension_numbers<[2], [0], [0, 1], [1], [0, 0, 0, 1, 1, 1], [], []>} : vector<2x16x32xf32>, vector<32x128xf32>, vector<2x16x128xf32> -> vector<2x16x128xf32>
    %c0_5 = arith.constant 0 : index
    %c0_6 = arith.constant 0 : index
    %7 = vector.load %arg3[%c0_5, %c0_6] : memref<1x128xf32, #tpu.memory_space<vmem>>, vector<1x128xf32>
    %8 = vector.shape_cast %7 : vector<1x128xf32> to vector<1x1x128xf32>
    %9 = vector.broadcast %8 : vector<1x1x128xf32> to vector<2x16x128xf32>
    %10 = arith.addf %6, %9 : vector<2x16x128xf32>
    %c0_7 = arith.constant 0 : index
    %c0_8 = arith.constant 0 : index
    %c0_9 = arith.constant 0 : index
    %11 = vector.load %arg4[%c0_7, %c0_8, %c0_9] : memref<2x16x128xf32, #tpu.memory_space<vmem>>, vector<2x16x128xf32>
    tpu.vector_store %arg4[%c0_7, %c0_8, %c0_9], %10 {strides = array<i32>} : memref<2x16x128xf32, #tpu.memory_space<vmem>>, vector<2x16x128xf32>,
    return
  }
  func.func @transform_0(%arg0: i32) -> (i32, i32, i32) {
    %c0_i32 = arith.constant 0 : i32
    %c0_i32_0 = arith.constant 0 : i32
    %c0_i32_1 = arith.constant 0 : i32
    return %arg0, %c0_i32, %c0_i32_0 : i32, i32, i32
  }
  func.func @transform_1(%arg0: i32) -> (i32, i32) {
    %c0_i32 = arith.constant 0 : i32
    %c0_i32_0 = arith.constant 0 : i32
    %c0_i32_1 = arith.constant 0 : i32
    return %c0_i32, %c0_i32_0 : i32, i32
  }
  func.func @transform_2(%arg0: i32) -> (i32, i32) {
    %c0_i32 = arith.constant 0 : i32
    %c0_i32_0 = arith.constant 0 : i32
    %c0_i32_1 = arith.constant 0 : i32
    return %c0_i32, %c0_i32_0 : i32, i32
  }
  func.func @transform_3(%arg0: i32) -> (i32, i32, i32) {
    %c0_i32 = arith.constant 0 : i32
    %c0_i32_0 = arith.constant 0 : i32
    %c0_i32_1 = arith.constant 0 : i32
    return %arg0, %c0_i32, %c0_i32_0 : i32, i32, i32
  }
}

</mosaic_0001>

<llo_original>
// kernel: perm_equi1_max.1
$region0: #{perm_equi1_max.1}
  #allocation0 [shape = 'u32[]', space=smem, size = 0x4, offset = 0x4, fixed_abs, tag = 'smem constant byte address 0x4 - core index']
  #allocation1 [shape = 'u32[144,128]{1,0:T(1,128)}', space=vmem, size = 0x12000, scoped, tag = 'internal scratch']
  %s0 = inlined_call_operand.hbm [shape: f32[8,16,32], index: 0, kind: input, shape index: {}]
  %s1 = inlined_call_operand.vmem [shape: f32[32,128], index: 1, kind: input, shape index: {}]
  %s2 = inlined_call_operand.vmem [shape: f32[1,128], index: 2, kind: input, shape index: {}]
  %s3 = inlined_call_operand.hbm [shape: f32[8,16,128], index: 3, kind: output, shape index: {}]
  %s4 = sld [smem:[#allocation0]]
  $region49: #{perm_equi1_max.1} parent=0
    _
  %s6 = ssub.s32 1, %s4
  %s7 = scalar_select 0, %s6, %s4
  $region1: #{perm_equi1_max.1} parent=0
    #allocation2 [shape = 'u8[32768]{0}', space=vmem, size = 0x8000, scoped, tag = 'input window, operand 0']
    #allocation3 [shape = 's32[2]{0}', space=sflag, size = 0x8, scoped, tag = 'scoped memory for perm_equi1_max.1']
    #allocation4 [shape = 's32[2]{0}', space=sflag, size = 0x8, scoped, tag = 'scoped memory for perm_equi1_max.1']
    #allocation5 [shape = 'u8[32768]{0}', space=vmem, size = 0x8000, scoped, tag = 'output window, operand 0']
    %8 = vsyncpa [#allocation3], 0
    %s9 = scalar_lea.sflag [#allocation3], 1
    %10 = vsyncpa %s9, 0
    %11 = vsyncpa [#allocation4], 0
    %s12 = scalar_lea.sflag [#allocation4], 1
    %13 = vsyncpa %s12, 0
    loop: start=0, step=1, limit=6
    $region2: #{perm_equi1_max.1} parent=1 // loop_pre_header
      _
    $region3: #{perm_equi1_max.1} parent=1 // loop_header
      %s15 = sphi 0, %s19
      %p16 = scmp.ge.s32.totalorder %s15, 6
      %s25 = sphi 0, %s27
      %s28 = sphi 0, %s25
      %s29 = sphi 0, %s28
      %s45 = sphi 0, %s29
      %s49 = sphi 0, %s49
      %s51 = sphi 0, %s49
      %s52 = sphi 0, %s51
      %s66 = sphi 0, %s52
      %s70 = sphi 0, %s70
      %s72 = sphi 0, %s70
      %s73 = sphi 0, %s72
      %s87 = sphi 0, %s73
      %s93 = sphi 0, %s95
      %s96 = sphi 0, %s93
      %s97 = sphi 0, %s96
      %s113 = sphi 0, %s97
    $region4: #{perm_equi1_max.1} parent=1 // loop_header_branch
      %18 = sbr.rel (%p16) target = $region8
    $region5: #{perm_equi1_max.1} parent=1 // loop_body
      %s20 = ssub.s32 %s15, 1
      %s21 = ssub.s32 %s15, 2
      %s22 = sadd.s32 %s15, 1
      %s23 = ssub.s32 %s15, %s22
      %p24 = scmp.eq.s32.totalorder %s23, 0
      %s26 = sadd.s32 %s25, 1
      %s27 = scalar_select %p24, %s25, %s26
      %p30 = pneg %p24
      %p31 = scmp.eq.s32.totalorder %s15, 3
      %p32 = por %p30, %p31
      %p33 = scmp.ne.s32.totalorder %s25, %s28
      %p34 = scmp.eq.s32.totalorder %s15, 0
      %p35 = por %p33, %p34
      %p36 = scmp.ne.s32.totalorder %s25, %s28
      %p37 = scmp.eq.s32.totalorder %s20, 3
      %p38 = por %p36, %p37
      %p39 = scmp.ne.s32.totalorder %s28, %s29
      %p40 = scmp.eq.s32.totalorder %s20, 0
      %p41 = por %p39, %p40
      %p42 = scmp.ne.s32.totalorder %s28, %s29
      %p43 = scmp.eq.s32.totalorder %s21, 3
      %p44 = por %p42, %p43
      %p46 = scmp.ne.s32.totalorder %s29, %s45
      %p47 = scmp.eq.s32.totalorder %s21, 0
      %p48 = por %p46, %p47
      %s50 = sadd.s32 %s49, 1
      %p53 = scmp.eq.s32.totalorder %s15, 3
      %p54 = scmp.ne.s32.totalorder %s49, %s51
      %p55 = scmp.eq.s32.totalorder %s15, 0
      %p56 = por %p54, %p55
      %p57 = scmp.ne.s32.totalorder %s49, %s51
      %p58 = scmp.eq.s32.totalorder %s20, 3
      %p59 = por %p57, %p58
      %p60 = scmp.ne.s32.totalorder %s51, %s52
      %p61 = scmp.eq.s32.totalorder %s20, 0
      %p62 = por %p60, %p61
      %p63 = scmp.ne.s32.totalorder %s51, %s52
      %p64 = scmp.eq.s32.totalorder %s21, 3
      %p65 = por %p63, %p64
      %p67 = scmp.ne.s32.totalorder %s52, %s66
      %p68 = scmp.eq.s32.totalorder %s21, 0
      %p69 = por %p67, %p68
      %s71 = sadd.s32 %s70, 1
      %p74 = scmp.eq.s32.totalorder %s15, 3
      %p75 = scmp.ne.s32.totalorder %s70, %s72
      %p76 = scmp.eq.s32.totalorder %s15, 0
      %p77 = por %p75, %p76
      %p78 = scmp.ne.s32.totalorder %s70, %s72
      %p79 = scmp.eq.s32.totalorder %s20, 3
      %p80 = por %p78, %p79
      %p81 = scmp.ne.s32.totalorder %s72, %s73
      %p82 = scmp.eq.s32.totalorder %s20, 0
      %p83 = por %p81, %p82
      %p84 = scmp.ne.s32.totalorder %s72, %s73
      %p85 = scmp.eq.s32.totalorder %s21, 3
      %p86 = por %p84, %p85
      %p88 = scmp.ne.s32.totalorder %s73, %s87
      %p89 = scmp.eq.s32.totalorder %s21, 0
      %p90 = por %p88, %p89
      %s91 = ssub.s32 %s15, %s22
      %p92 = scmp.eq.s32.totalorder %s91, 0
      %s94 = sadd.s32 %s93, 1
      %s95 = scalar_select %p92, %s93, %s94
      %p98 = pneg %p92
      %p99 = scmp.eq.s32.totalorder %s15, 3
      %p100 = por %p98, %p99
      %p101 = scmp.ne.s32.totalorder %s93, %s96
      %p102 = scmp.eq.s32.totalorder %s15, 0
      %p103 = por %p101, %p102
      %p104 = scmp.ne.s32.totalorder %s93, %s96
      %p105 = scmp.eq.s32.totalorder %s20, 3
      %p106 = por %p104, %p105
      %p107 = scmp.ne.s32.totalorder %s96, %s97
      %p108 = scmp.eq.s32.totalorder %s20, 0
      %p109 = por %p107, %p108
      %p110 = scmp.ne.s32.totalorder %s96, %s97
      %p111 = scmp.eq.s32.totalorder %s21, 3
      %p112 = por %p110, %p111
      %p114 = scmp.ne.s32.totalorder %s97, %s113
      %p115 = scmp.eq.s32.totalorder %s21, 0
      %p116 = por %p114, %p115
      %p117 = scmp.le.s32.totalorder 1, %s15
      %p118 = scmp.lt.s32.totalorder %s15, 5
      %p119 = pnand %p117, %p118
      %p120 = pneg %p119
      // Predicated region
      $region9: #{perm_equi1_max.1} parent=5 // pred_check
        _
      $region10: #{perm_equi1_max.1} parent=5 // pred_check_branch
        %122 = sbr.rel (%p119) target = $region12
      $region11: #{perm_equi1_max.1} parent=5 // pred_region
        %s123 = ssub.s32 %s15, 1
        // Predicated region
        $region13: #{perm_equi1_max.1} parent=11 // pred_check
          %p124 = pneg %p62
        $region14: #{perm_equi1_max.1} parent=11 // pred_check_branch
          %126 = sbr.rel (%p124) target = $region16
        $region15: #{perm_equi1_max.1} parent=11 // pred_region
          _
        $region16: #{perm_equi1_max.1} parent=11 // pred_fallthru
          _
        // Predicated region
        $region17: #{perm_equi1_max.1} parent=11 // pred_check
          %p127 = pneg %p83
        $region18: #{perm_equi1_max.1} parent=11 // pred_check_branch
          %129 = sbr.rel (%p127) target = $region20
        $region19: #{perm_equi1_max.1} parent=11 // pred_region
          _
        $region20: #{perm_equi1_max.1} parent=11 // pred_fallthru
          _
      $region12: #{perm_equi1_max.1} parent=5 // pred_fallthru
        _
      %p130 = scmp.lt.s32.totalorder %s15, 4
      // Predicated region
      $region21: #{perm_equi1_max.1} parent=5 // pred_check
        %p131 = pneg %p130
      $region22: #{perm_equi1_max.1} parent=5 // pred_check_branch
        %133 = sbr.rel (%p131) target = $region24
      $region23: #{perm_equi1_max.1} parent=5 // pred_region
        // Predicated region
        $region25: #{perm_equi1_max.1} parent=23 // pred_check
          %p134 = pneg %p35
        $region26: #{perm_equi1_max.1} parent=23 // pred_check_branch
          %136 = sbr.rel (%p134) target = $region28
        $region27: #{perm_equi1_max.1} parent=23 // pred_region
          %s137 = sand.u32 %s25, 1
          %s138 = scalar_lea.sflag [#allocation3], %s137
          %s139 = sand.u32 %s25, 1
          %s140 = smul.addr %s139, 32
          %s141 = scalar_lea.vmem [#allocation2], %s140
          %s142 = smul.u32 2, %s15
          %s144 = ssub.s32 512, 512
          %145 = vsyncadd %s138, %s144
          %s146 = smul.addr %s142, 2
          %s147 = smul.addr %s146, 128
          %s148 = scalar_lea.hbm %s0, %s147
          %s149 = sshll.u32 %s141, 4
          %s150 = int_to_ptr.vmem [resolvable:$true] %s149
          %155 = dma.hbm_to_vmem [thread:$0]  %s148, 512, %s150, %s138, 128, 128, 8
        $region28: #{perm_equi1_max.1} parent=23 // pred_fallthru
          _
      $region24: #{perm_equi1_max.1} parent=5 // pred_fallthru
        _
      %p156 = scmp.le.s32.totalorder 1, %s15
      %p157 = scmp.lt.s32.totalorder %s15, 5
      %p158 = pnand %p156, %p157
      %p159 = pneg %p158
      // Predicated region
      $region29: #{perm_equi1_max.1} parent=5 // pred_check
        _
      $region30: #{perm_equi1_max.1} parent=5 // pred_check_branch
        %161 = sbr.rel (%p158) target = $region32
      $region31: #{perm_equi1_max.1} parent=5 // pred_region
        %s162 = ssub.s32 %s15, 1
        %s163 = sand.u32 %s28, 1
        %s164 = scalar_lea.sflag [#allocation3], %s163
        %s165 = sand.u32 %s28, 1
        %s166 = smul.addr %s165, 32
        %s167 = scalar_lea.vmem [#allocation2], %s166
        // Predicated region
        $region33: #{perm_equi1_max.1} parent=31 // pred_check
          %p168 = pneg %p41
        $region34: #{perm_equi1_max.1} parent=31 // pred_check_branch
          %170 = sbr.rel (%p168) target = $region36
        $region35: #{perm_equi1_max.1} parent=31 // pred_region
          %171 = dma.done %s164, 512
        $region36: #{perm_equi1_max.1} parent=31 // pred_fallthru
          _
        %s172 = sand.u32 %s28, 1
        %s173 = scalar_lea.sflag [#allocation3], %s172
        %s174 = sand.u32 %s28, 1
        %s175 = smul.addr %s174, 32
        %s176 = scalar_lea.vmem [#allocation2], %s175
        %p177 = pneg %p41
        %p178 = pneg %p38
        %p179 = pneg %p62
        %p180 = pneg %p59
        %p181 = pneg %p83
        %p182 = pneg %p80
        %p183 = pneg %p109
        %p184 = pneg %p106
        %s185 = sand.u32 %s96, 1
        %s186 = scalar_lea.sflag [#allocation4], %s185
        %s187 = sand.u32 %s96, 1
        %s188 = smul.addr %s187, 32
        %s189 = scalar_lea.vmem [#allocation5], %s188
        %s190 = smul.u32 2, %s20
        %s191 = smul.u32 2, %s20
        %v192 = vld [vmem:[%s167] sm:$0xff]
        %v193 = vld [vmem:[%s167 + $0x8] sm:$0xff]
        %v194 = vld [vmem:[%s167 + $0x10] sm:$0xff]
        %v195 = vld [vmem:[%s167 + $0x18] sm:$0xff]
        %vm196 = vcmask 261120
        %v197 = vsel %vm196, %v192, -inf
        %v198 = vsel %vm196, %v193, -inf
        %v199 = vmax.f32 %v197, %v198
        %v200 = vrot.slane %v199, 4
        %v201 = vmax.f32 %v199, %v200
        %v202 = vrot.slane %v201, 2
        %v203 = vmax.f32 %v201, %v202
        %v204 = vrot.slane %v203, 1
        %v205 = vmax.f32 %v203, %v204
        %v206 = vsel %vm196, %v194, -inf
        %v207 = vsel %vm196, %v195, -inf
        %v208 = vmax.f32 %v206, %v207
        %v209 = vrot.slane %v208, 4
        %v210 = vmax.f32 %v208, %v209
        %v211 = vrot.slane %v210, 2
        %v212 = vmax.f32 %v210, %v211
        %v213 = vrot.slane %v212, 1
        %v214 = vmax.f32 %v212, %v213
        %v215 = vsub.f32 %v192, %v205
        %v216 = vsub.f32 %v193, %v205
        %v217 = vsub.f32 %v194, %v214
        %v218 = vsub.f32 %v195, %v214
        %v219 = vld [vmem:[%s1] sm:$0xff]
        %v220 = vld [vmem:[%s1 + $0x8] sm:$0xff]
        %v221 = vld [vmem:[%s1 + $0x10] sm:$0xff]
        %v222 = vld [vmem:[%s1 + $0x18] sm:$0xff]
        %v223 = vld [vmem:[%s2] sm:$0x1]
        %v225 = vlaneseq
        %v226 = vshrl.u32 %v225, 7
        %v227 = vsub.s32 0, %v226
        %v228 = vrot.slane %v223, %v227
        %v231 = vsel %vm196, %v215, 0
        %v234 = vsel %vm196, %v216, 0
        %v237 = vsel %vm196, %v217, 0
        %v240 = vsel %vm196, %v218, 0
        %242 = vmatprep.subr.mxu0 0.0
        %243 = vmatpush1.msra.mxu0 %v219
        %244 = vmatprep.subr.mxu0 0.0
        %245 = vmatpush1.msra.mxu0 %v220
        %246 = vmatprep.subr.mxu0 0.0
        %247 = vmatpush1.msra.mxu0 %v221
        %248 = vmatprep.subr.mxu0 0.0
        %249 = vmatpush1.msra.mxu0 %v222
        %250 = vmatprep.subr.mxu0 0.0
        %251 = vmatpush1.msra.mxu0 0.0
        %252 = vmatprep.subr.mxu0 0.0
        %253 = vmatpush1.msra.mxu0 0.0
        %254 = vmatprep.subr.mxu0 0.0
        %255 = vmatpush1.msra.mxu0 0.0
        %256 = vmatprep.subr.mxu0 0.0
        %257 = vmatpush1.msra.mxu0 0.0
        %258 = vmatprep.subr.mxu0 0.0
        %259 = vmatpush1.msra.mxu0 0.0
        %260 = vmatprep.subr.mxu0 0.0
        %261 = vmatpush1.msra.mxu0 0.0
        %262 = vmatprep.subr.mxu0 0.0
        %263 = vmatpush1.msra.mxu0 0.0
        %264 = vmatprep.subr.mxu0 0.0
        %265 = vmatpush1.msra.mxu0 0.0
        %266 = vmatprep.subr.mxu0 0.0
        %267 = vmatpush1.msra.mxu0 0.0
        %268 = vmatprep.subr.mxu0 0.0
        %269 = vmatpush1.msra.mxu0 0.0
        %270 = vmatprep.subr.mxu0 0.0
        %271 = vmatpush1.msra.mxu0 0.0
        %272 = vmatprep.subr.mxu0 0.0
        %273 = vmatpush1.msra.mxu0 0.0
        %274 = vmatprep.subr.mxu0 0.0
        %275 = vmatpush1.msra.mxu0 0.0
        %276 = vmatprep.subr.mxu0 0.0
        %277 = vmatpush1.msra.mxu0 0.0
        %278 = vmatprep.subr.mxu0 0.0
        %279 = vmatpush1.msra.mxu0 0.0
        %280 = vmatprep.subr.mxu0 0.0
        %281 = vmatpush1.msra.mxu0 0.0
        %282 = vmatprep.subr.mxu0 0.0
        %283 = vmatpush1.msra.mxu0 0.0
        %284 = vmatprep.subr.mxu0 0.0
        %285 = vmatpush1.msra.mxu0 0.0
        %286 = vmatprep.subr.mxu0 0.0
        %287 = vmatpush1.msra.mxu0 0.0
        %288 = vmatprep.subr.mxu0 0.0
        %289 = vmatpush1.msra.mxu0 0.0
        %290 = vmatprep.subr.mxu0 0.0
        %291 = vmatpush1.msra.mxu0 0.0
        %292 = vmatprep.subr.mxu0 0.0
        %293 = vmatpush1.msra.mxu0 0.0
        %294 = vmatprep.subr.mxu0 0.0
        %295 = vmatpush1.msra.mxu0 0.0
        %296 = vmatprep.subr.mxu0 0.0
        %297 = vmatpush1.msra.mxu0 0.0
        %298 = vmatprep.subr.mxu0 0.0
        %299 = vmatpush1.msra.mxu0 0.0
        %300 = vmatprep.subr.mxu0 0.0
        %301 = vmatpush1.msra.mxu0 0.0
        %302 = vmatprep.subr.mxu0 0.0
        %303 = vmatpush1.msra.mxu0 0.0
        %304 = vmatprep.subr.mxu0 0.0
        %305 = vmatpush1.msra.mxu0 0.0
        %306 = vmatprep.mubr.f32.mxu0 0.0
        %307 = vmatmul.mubr.f32.gmra.mrb[0].mxu0 %v231
        %v308 = vpop.f32.mrb[0].mxu0
        %v309 = vadd.f32 %v228, %v308
        %v310 = vpop.f32.mrb[0].mxu0
        %311 = vmatprep.mubr.f32.mxu0 0.0
        %312 = vmatmul.mubr.f32.gmra.mrb[0].mxu0 %v234
        %v313 = vpop.f32.mrb[0].mxu0
        %v314 = vadd.f32 %v228, %v313
        %v315 = vpop.f32.mrb[0].mxu0
        %316 = vmatprep.mubr.f32.mxu0 0.0
        %317 = vmatmul.mubr.f32.gmra.mrb[0].mxu0 %v237
        %v318 = vpop.f32.mrb[0].mxu0
        %v319 = vadd.f32 %v228, %v318
        %v320 = vpop.f32.mrb[0].mxu0
        %321 = vmatprep.mubr.f32.mxu0 0.0
        %322 = vmatmul.mubr.f32.gmra.mrb[0].mxu0 %v240
        %v323 = vpop.f32.mrb[0].mxu0
        %v324 = vadd.f32 %v228, %v323
        %v325 = vpop.f32.mrb[0].mxu0
        %326 = vdwg.mxu0
        %327 = vst [vmem:[%s189] sm:$0xff] %v309
        %328 = vst [vmem:[%s189 + $0x8] sm:$0xff] %v314
        %329 = vst [vmem:[%s189 + $0x10] sm:$0xff] %v319
        %330 = vst [vmem:[%s189 + $0x18] sm:$0xff] %v324
        %s331 = sand.u32 %s96, 1
        %s332 = scalar_lea.sflag [#allocation4], %s331
        %s333 = sand.u32 %s96, 1
        %s334 = smul.addr %s333, 32
        %s335 = scalar_lea.vmem [#allocation5], %s334
        // Predicated region
        $region37: #{perm_equi1_max.1} parent=31 // pred_check
          %p336 = pneg %p106
        $region38: #{perm_equi1_max.1} parent=31 // pred_check_branch
          %338 = sbr.rel (%p336) target = $region40
        $region39: #{perm_equi1_max.1} parent=31 // pred_region
          %s339 = smul.u32 2, %s20
          %s341 = ssub.s32 512, 512
          %342 = vsyncadd %s332, %s341
          %s343 = smul.addr %s339, 2
          %s344 = smul.addr %s343, 128
          %s345 = scalar_lea.hbm %s3, %s344
          %s346 = sshll.u32 %s335, 4
          %s347 = int_to_ptr.vmem [resolvable:$true] %s346
          %352 = dma.vmem_to_hbm [thread:$0]  %s347, 512, %s345, %s332, 128, 128, 8
        $region40: #{perm_equi1_max.1} parent=31 // pred_fallthru
          _
      $region32: #{perm_equi1_max.1} parent=5 // pred_fallthru
        _
      %p353 = scmp.le.s32.totalorder 2, %s15
      // Predicated region
      $region41: #{perm_equi1_max.1} parent=5 // pred_check
        %p354 = pneg %p353
      $region42: #{perm_equi1_max.1} parent=5 // pred_check_branch
        %356 = sbr.rel (%p354) target = $region44
      $region43: #{perm_equi1_max.1} parent=5 // pred_region
        %s357 = ssub.s32 %s15, 2
        // Predicated region
        $region45: #{perm_equi1_max.1} parent=43 // pred_check
          %p358 = pneg %p112
        $region46: #{perm_equi1_max.1} parent=43 // pred_check_branch
          %360 = sbr.rel (%p358) target = $region48
        $region47: #{perm_equi1_max.1} parent=43 // pred_region
          %s361 = sand.u32 %s97, 1
          %s362 = scalar_lea.sflag [#allocation4], %s361
          %s363 = sand.u32 %s97, 1
          %s364 = smul.addr %s363, 32
          %s365 = scalar_lea.vmem [#allocation5], %s364
          %366 = dma.done %s362, 512
        $region48: #{perm_equi1_max.1} parent=43 // pred_fallthru
          _
      $region44: #{perm_equi1_max.1} parent=5 // pred_fallthru
        _
    $region6: #{perm_equi1_max.1} parent=1 // loop_footer
      %s19 = sadd.s32 1, %s15
    $region7: #{perm_equi1_max.1} parent=1 // loop_footer_branch
      %14 = sbr.rel target = $region3
    $region8: #{perm_equi1_max.1} parent=1 // loop_exit
      _
    %367 = vsyncpa [#allocation3], 1
    %s368 = scalar_lea.sflag [#allocation3], 1
    %369 = vsyncpa %s368, 1
    %370 = vsyncpa [#allocation4], 1
    %s371 = scalar_lea.sflag [#allocation4], 1
    %372 = vsyncpa %s371, 1

</llo_original>
